<compile_context>
chip_gen: v6e
topology: v6e:2x2x1
jax: 0.10.0
libtpu: 0.0.40
codegen_flags: <defaults>
</compile_context>

<pallas_src>
import functools

import jax
import jax.numpy as jnp
from jax import lax
from jax.experimental import pallas as pl
from jax.experimental.pallas import tpu as pltpu

_LANE = 128


def _round_up(x, m):
    return ((x + m - 1) // m) * m


def _tpu_params():
    """Best-effort generation detection.

    Returns (parallel_tensorcores, streamed_vmem_budget_bytes, vmem_limit_cap_bytes).
    Falls back to conservative values if the device kind cannot be read.
    """
    kind = ""
    try:
        kind = jax.devices()[0].device_kind.lower()
    except Exception:
        pass
    if "v7" in kind:        # 2 TCs/chip, 64 MiB physical VMEM per TC
        return 2, 24 << 20, 48 << 20
    if "v6" in kind:        # 1 TC, 128 MiB physical (32 MiB default scoped)
        return 1, 48 << 20, 96 << 20
    if "v5 lite" in kind or "v5e" in kind or "v5lite" in kind:
        return 1, 48 << 20, 96 << 20    # 128 MiB physical, 16 MiB default -> raise
    return 1, 12 << 20, 32 << 20        # unknown: stay inside every default limit


def _attn_kernel(loc_ref, qf_ref, h_ref, out_ref, *, seq_len):
    # loc_ref : (TB, 1)      int32   aspect positions for this batch tile
    # qf_ref  : (TB, D)      f32     fused queries  qf = (aspect @ Wq^T) @ Wk
    # h_ref   : (TB, D, TS)  stream  H_GCN tile: D on sublanes, S on lanes
    # out_ref : (TB, nS, TS) f32     raw scores (stash), then softmax weights.
    #                                Block index is constant over the S axis,
    #                                so it stays resident and doubles as the
    #                                scores scratch (no extra VMEM buffer).
    j = pl.program_id(1)
    ts = h_ref.shape[-1]

    h = h_ref[...].astype(jnp.float32)                       # (TB, D, TS)
    qf = qf_ref[...].astype(jnp.float32)                     # (TB, D)
    # scores[b, s] = <qf[b], H[b, :, s]>  — sublane-direction contraction;
    # no K projection, no lane reduce, result already lane-dense along S.
    s = jnp.sum(h * qf[:, :, None], axis=1)                  # (TB, TS)

    col = j * ts + lax.broadcasted_iota(jnp.int32, s.shape, 1)
    # torch: scores[b, aspect_location[b, 0]] = 0 (zero, NOT -inf), pre-softmax.
    # Out-of-range aspect_location simply masks nothing (torch would raise).
    s = jnp.where(col == loc_ref[...], jnp.float32(0.0), s)
    # Padded sequence columns must not receive softmax mass.
    s = jnp.where(col < seq_len, s, jnp.float32(-jnp.inf))

    # Stash this S-tile's raw scores into the resident output block.
    out_ref[:, pl.ds(j, 1), :] = s[:, None, :]

    @pl.when(j == pl.num_programs(1) - 1)
    def _():
        sc = out_ref[...]                                     # (TB, nS, TS)
        m = jnp.max(jnp.max(sc, axis=2, keepdims=True), axis=1, keepdims=True)
        e = jnp.exp(sc - m)                                   # exp(-inf) = 0 on padding
        d = jnp.sum(jnp.sum(e, axis=2, keepdims=True), axis=1, keepdims=True)
        out_ref[...] = e / d                                  # exact normalization


def attention_layer(H_GCN, aspect_term, aspect_location, Wq, Wk, *,
                    stream_dtype=jnp.bfloat16, max_s_tile=2048,
                    max_batch_tile=None):
    """Forward pass of Attention_Layer.

    H_GCN: (B, S, D), aspect_term: (B, 1, D), aspect_location: (B, L) int,
    Wq, Wk: (D, D) torch-style Linear weights (out, in).  Returns (B, 1, S) f32.
    """
    B, S, D = H_GCN.shape
    assert aspect_term.shape == (B, 1, D)
    assert Wq.shape == (D, D) and Wk.shape == (D, D)
    f32 = jnp.float32

    # Hoisted query projection (a tiny (B,D)x(D,D) matmul badly underfills the
    # MXU in-kernel):  scores = (a Wq^T)(H Wk^T)^T = ((a Wq^T) Wk) H^T.
    asp = aspect_term.reshape(B, D).astype(f32)
    qf = (asp @ jnp.asarray(Wq, f32).T) @ jnp.asarray(Wk, f32)       # (B, D)

    loc = jnp.asarray(aspect_location, jnp.int32)[:, :1]             # (B, 1)

    # Lane-friendly streaming layout: D on sublanes (only /8 tiling, no 128-lane
    # padding), S on lanes.  bf16 stream halves the dominant HBM traffic.
    H_t = jnp.transpose(H_GCN, (0, 2, 1)).astype(stream_dtype)       # (B, D, S)

    # ---- S tiling (bounded streamed slab at any sequence length) ----------
    max_s_tile = max(_LANE, (int(max_s_tile) // _LANE) * _LANE)
    S_pad = _round_up(S, _LANE)
    if S_pad <= max_s_tile:
        TS = S_pad
    else:
        TS = max_s_tile
        S_pad = _round_up(S, TS)
    nS = S_pad // TS
    # TODO(synk): for extreme S (many MiB of scores per row) also tile the
    # score stash / add a two-pass max-sum instead of one resident out block.

    # ---- batch tiling from the *padded* per-row VMEM footprint -------------
    num_cores, vmem_budget, vmem_cap = _tpu_params()
    stream_bytes = jnp.dtype(stream_dtype).itemsize
    row_bytes = (2 * _round_up(D, 16) * TS * stream_bytes    # H tile, double-buffered
                 + 2 * _round_up(nS, 8) * TS * 4             # resident out block (x2 bufs)
                 + 4 * _LANE * 4)                            # qf + loc (lane-padded, x2)
    vmem_tb = max(8, (vmem_budget // row_bytes) // 8 * 8)

    B_pad = _round_up(B, 8)
    if num_cores >= 2 and B_pad >= 16:
        tb_target = _round_up(B_pad // 2, 8)     # >= 2 parallel steps on 2-TC parts
    else:
        tb_target = B_pad                        # single TC: one big tile, fewest steps
    TB = min(tb_target, vmem_tb)
    if max_batch_tile is not None:
        TB = min(TB, max(8, (int(max_batch_tile) // 8) * 8))
    TB = max(TB, 8)
    B_pad = _round_up(B_pad, TB)

    # ---- pad operands -------------------------------------------------------
    H_t = jnp.pad(H_t, ((0, B_pad - B), (0, 0), (0, S_pad - S)))
    qf = jnp.pad(qf, ((0, B_pad - B), (0, 0)))
    loc = jnp.pad(loc, ((0, B_pad - B), (0, 0)))

    vmem_est = TB * row_bytes + (2 << 20)
    vmem_limit = int(min(vmem_cap, max(32 << 20, int(vmem_est * 1.5))))

    grid_spec = pltpu.PrefetchScalarGridSpec(
        num_scalar_prefetch=0,
        grid=(B_pad // TB, nS),
        in_specs=[
            pl.BlockSpec((TB, 1), lambda i, j: (i, 0)),          # aspect_location
            pl.BlockSpec((TB, D), lambda i, j: (i, 0)),          # fused query
            pl.BlockSpec((TB, D, TS), lambda i, j: (i, 0, j)),   # H (streamed)
        ],
        out_specs=pl.BlockSpec((TB, nS, TS), lambda i, j: (i, 0, 0)),
    )

    out3 = pl.pallas_call(
        functools.partial(_attn_kernel, seq_len=S),
        out_shape=jax.ShapeDtypeStruct((B_pad, nS, TS), jnp.float32),
        grid_spec=grid_spec,
        compiler_params=pltpu.CompilerParams(
            dimension_semantics=("parallel", "arbitrary"),
            vmem_limit_bytes=vmem_limit),
    )(loc, qf, H_t)

    alpha = out3.reshape(B_pad, S_pad)[:B, :S]
    return alpha.reshape(B, 1, S)


def _reference(H_GCN, aspect_term, aspect_location, Wq, Wk):
    Q = aspect_term @ Wq.T                        # (B,1,D)
    K = H_GCN @ Wk.T                              # (B,S,D)
    scores = jnp.einsum("bqd,bsd->bqs", Q, K)     # (B,1,S)
    B = scores.shape[0]
    scores = scores.at[jnp.arange(B), 0, aspect_location[:, 0]].set(0.0)
    return jax.nn.softmax(scores, axis=2)


if __name__ == "__main__":
    hidden_dim = 16
    D = hidden_dim * 2                            # 32
    key = jax.random.PRNGKey(0)
    k1, k2, k3, k4, k5, k6, k7, k8 = jax.random.split(key, 8)

    bound = 1.0 / (D ** 0.5)                      # torch Linear default init range
    Wq = jax.random.uniform(k1, (D, D), jnp.float32, -bound, bound)
    Wk = jax.random.uniform(k2, (D, D), jnp.float32, -bound, bound)
    # (V_linear exists in __init__ but its output never reaches `alpha`.)

    # --- small demo shapes (B=2, S=8) ---------------------------------------
    B, S = 2, 8
    H = jax.random.normal(k3, (B, S, D), jnp.float32)
    a = jax.random.normal(k4, (B, 1, D), jnp.float32)
    loc = jax.random.randint(k5, (B, 1), 0, S, jnp.int32)
    ref = _reference(H, a, loc, Wq, Wk)

    # f32 streaming: matches the reference up to summation order.
    alpha32 = jax.block_until_ready(
        attention_layer(H, a, loc, Wq, Wk, stream_dtype=jnp.float32))
    assert alpha32.shape == (B, 1, S)
    assert jnp.allclose(alpha32, ref, atol=1e-4, rtol=1e-4), \
        float(jnp.max(jnp.abs(alpha32 - ref)))

    # bf16 streaming (recommended config: halves the dominant HBM traffic).
    alpha_bf = jax.block_until_ready(
        attention_layer(H, a, loc, Wq, Wk, stream_dtype=jnp.bfloat16))
    ref_bf = _reference(H.astype(jnp.bfloat16).astype(jnp.float32), a, loc, Wq, Wk)
    assert jnp.allclose(alpha_bf, ref_bf, atol=1e-4, rtol=1e-3), \
        float(jnp.max(jnp.abs(alpha_bf - ref_bf)))
    assert jnp.allclose(alpha_bf, ref, atol=5e-2, rtol=5e-2)

    # --- multi-tile path: several batch tiles and S tiles -------------------
    B2, S2 = 20, 300
    H2 = jax.random.normal(k6, (B2, S2, D), jnp.float32)
    a2 = jax.random.normal(k7, (B2, 1, D), jnp.float32)
    loc2 = jax.random.randint(k8, (B2, 1), 0, S2, jnp.int32)
    alpha2 = jax.block_until_ready(
        attention_layer(H2, a2, loc2, Wq, Wk, stream_dtype=jnp.bfloat16,
                        max_s_tile=128, max_batch_tile=8))
    ref2 = _reference(H2.astype(jnp.bfloat16).astype(jnp.float32), a2, loc2, Wq, Wk)
    assert alpha2.shape == (B2, 1, S2)
    assert jnp.allclose(alpha2, ref2, atol=1e-4, rtol=1e-3), \
        float(jnp.max(jnp.abs(alpha2 - ref2)))
    assert jnp.allclose(jnp.sum(alpha2, axis=-1), 1.0, atol=1e-4)

    print("KERNEL_OK")
</pallas_src>

<mosaic_0001>
module attributes {stable_mosaic.version = 11 : i64} {
  func.func @_attn_kernel(%arg0: i32, %arg1: i32, %arg2: memref<8x1xi32, #tpu.memory_space<vmem>>, %arg3: memref<8x32xf32, #tpu.memory_space<vmem>>, %arg4: memref<8x32x128xf32, #tpu.memory_space<vmem>>, %arg5: memref<8x1x128xf32, #tpu.memory_space<vmem>>) attributes {dimension_semantics = [#tpu.dimension_semantics<parallel>, #tpu.dimension_semantics<arbitrary>], iteration_bounds = array<i64: 1, 1>, scalar_prefetch = 0 : i64, scratch_operands = 0 : i64, tpu.core_type = #tpu.core_type<tc>, window_params = [{transform_indices = @transform_0, window_bounds = array<i64: 8, 1>}, {transform_indices = @transform_1, window_bounds = array<i64: 8, 32>}, {transform_indices = @transform_2, window_bounds = array<i64: 8, 32, 128>}, {transform_indices = @transform_3, window_bounds = array<i64: 8, 1, 128>}]} {
    %c0 = arith.constant 0 : index
    %c0_0 = arith.constant 0 : index
    %c0_1 = arith.constant 0 : index
    %0 = vector.load %arg4[%c0, %c0_0, %c0_1] : memref<8x32x128xf32, #tpu.memory_space<vmem>>, vector<8x32x128xf32>
    %c0_2 = arith.constant 0 : index
    %c0_3 = arith.constant 0 : index
    %1 = vector.load %arg3[%c0_2, %c0_3] : memref<8x32xf32, #tpu.memory_space<vmem>>, vector<8x32xf32>
    %2 = vector.shape_cast %1 : vector<8x32xf32> to vector<8x32x1xf32>
    %3 = vector.broadcast %2 : vector<8x32x1xf32> to vector<8x32x128xf32>
    %4 = arith.mulf %0, %3 : vector<8x32x128xf32>
    %cst = arith.constant dense<0.000000e+00> : vector<8x128xf32>
    %5 = vector.multi_reduction <add>, %4, %cst [1] : vector<8x32x128xf32> to vector<8x128xf32>
    %c128_i32 = arith.constant 128 : i32
    %6 = arith.muli %arg1, %c128_i32 : i32
    %7 = tpu.iota {dimensions = array<i32: 1>} : vector<8x128xi32>
    %8 = vector.broadcast %6 : i32 to vector<8x128xi32>
    %9 = arith.addi %8, %7 : vector<8x128xi32>
    %c0_4 = arith.constant 0 : index
    %c0_5 = arith.constant 0 : index
    %10 = vector.load %arg2[%c0_4, %c0_5] : memref<8x1xi32, #tpu.memory_space<vmem>>, vector<8x1xi32>
    %11 = vector.broadcast %10 : vector<8x1xi32> to vector<8x128xi32>
    %12 = arith.cmpi eq, %9, %11 : vector<8x128xi32>
    %cst_6 = arith.constant 0.000000e+00 : f32
    %13 = vector.broadcast %cst_6 : f32 to vector<8x128xf32>
    %14 = arith.select %12, %13, %5 : vector<8x128xi1>, vector<8x128xf32>
    %c8_i32 = arith.constant 8 : i32
    %15 = vector.broadcast %c8_i32 : i32 to vector<8x128xi32>
    %16 = arith.cmpi slt, %9, %15 : vector<8x128xi32>
    %cst_7 = arith.constant 0xFF800000 : f32
    %17 = vector.broadcast %cst_7 : f32 to vector<8x128xf32>
    %18 = arith.select %16, %14, %17 : vector<8x128xi1>, vector<8x128xf32>
    %19 = vector.shape_cast %18 : vector<8x128xf32> to vector<8x1x128xf32>
    %c0_8 = arith.constant 0 : index
    %20 = arith.index_cast %arg1 : i32 to index
    %c0_9 = arith.constant 0 : index
    %21 = vector.load %arg5[%c0_8, %20, %c0_9] : memref<8x1x128xf32, #tpu.memory_space<vmem>>, vector<8x1x128xf32>
    tpu.vector_store %arg5[%c0_8, %20, %c0_9], %19 {strides = array<i32>} : memref<8x1x128xf32, #tpu.memory_space<vmem>>, vector<8x1x128xf32>,
    %c0_i32 = arith.constant 0 : i32
    %22 = arith.cmpi eq, %arg1, %c0_i32 : i32
    %23 = arith.extui %22 : i1 to i32
    %c0_i32_10 = arith.constant 0 : i32
    %24 = arith.cmpi ne, %23, %c0_i32_10 : i32
    scf.if %24 {
      %c0_11 = arith.constant 0 : index
      %c0_12 = arith.constant 0 : index
      %c0_13 = arith.constant 0 : index
      %25 = vector.load %arg5[%c0_11, %c0_12, %c0_13] : memref<8x1x128xf32, #tpu.memory_space<vmem>>, vector<8x1x128xf32>
      %cst_14 = arith.constant dense<0xFF800000> : vector<8x1xf32>
      %26 = vector.multi_reduction <maximumf>, %25, %cst_14 [2] : vector<8x1x128xf32> to vector<8x1xf32>
      %27 = vector.shape_cast %26 : vector<8x1xf32> to vector<8x1x1xf32>
      %cst_15 = arith.constant dense<0xFF800000> : vector<8x1xf32>
      %28 = vector.multi_reduction <maximumf>, %27, %cst_15 [1] : vector<8x1x1xf32> to vector<8x1xf32>
      %29 = vector.shape_cast %28 : vector<8x1xf32> to vector<8x1x1xf32>
      %30 = vector.broadcast %29 : vector<8x1x1xf32> to vector<8x1x128xf32>
      %31 = arith.subf %25, %30 : vector<8x1x128xf32>
      %32 = math.exp %31 : vector<8x1x128xf32>
      %cst_16 = arith.constant dense<0.000000e+00> : vector<8x1xf32>
      %33 = vector.multi_reduction <add>, %32, %cst_16 [2] : vector<8x1x128xf32> to vector<8x1xf32>
      %34 = vector.shape_cast %33 : vector<8x1xf32> to vector<8x1x1xf32>
      %cst_17 = arith.constant dense<0.000000e+00> : vector<8x1xf32>
      %35 = vector.multi_reduction <add>, %34, %cst_17 [1] : vector<8x1x1xf32> to vector<8x1xf32>
      %36 = vector.shape_cast %35 : vector<8x1xf32> to vector<8x1x1xf32>
      %37 = vector.broadcast %36 : vector<8x1x1xf32> to vector<8x1x128xf32>
      %38 = arith.divf %32, %37 : vector<8x1x128xf32>
      %c0_18 = arith.constant 0 : index
      %c0_19 = arith.constant 0 : index
      %c0_20 = arith.constant 0 : index
      %39 = vector.load %arg5[%c0_18, %c0_19, %c0_20] : memref<8x1x128xf32, #tpu.memory_space<vmem>>, vector<8x1x128xf32>
      tpu.vector_store %arg5[%c0_18, %c0_19, %c0_20], %38 {strides = array<i32>} : memref<8x1x128xf32, #tpu.memory_space<vmem>>, vector<8x1x128xf32>,
    } else {
    }
    return
  }
  func.func @transform_0(%arg0: i32, %arg1: i32) -> (i32, i32) {
    %c0_i32 = arith.constant 0 : i32
    %c0_i32_0 = arith.constant 0 : i32
    return %arg0, %c0_i32 : i32, i32
  }
  func.func @transform_1(%arg0: i32, %arg1: i32) -> (i32, i32) {
    %c0_i32 = arith.constant 0 : i32
    %c0_i32_0 = arith.constant 0 : i32
    return %arg0, %c0_i32 : i32, i32
  }
  func.func @transform_2(%arg0: i32, %arg1: i32) -> (i32, i32, i32) {
    %c0_i32 = arith.constant 0 : i32
    %c0_i32_0 = arith.constant 0 : i32
    return %arg0, %c0_i32, %arg1 : i32, i32, i32
  }
  func.func @transform_3(%arg0: i32, %arg1: i32) -> (i32, i32, i32) {
    %c0_i32 = arith.constant 0 : i32
    %c0_i32_0 = arith.constant 0 : i32
    %c0_i32_1 = arith.constant 0 : i32
    return %arg0, %c0_i32, %c0_i32_0 : i32, i32, i32
  }
}

</mosaic_0001>

<llo_original>
// kernel: tpu_custom_call.1
$region0: #{tpu_custom_call.1}
  #allocation0 [shape = 'u32[]', space=smem, size = 0x4, offset = 0x4, fixed_abs, tag = 'smem constant byte address 0x4 - core index']
  #allocation1 [shape = 'u32[144,128]{1,0:T(1,128)}', space=vmem, size = 0x12000, scoped, tag = 'internal scratch']
  %s0 = inlined_call_operand.vmem [shape: s32[8,1], index: 0, kind: input, shape index: {}]
  %s1 = inlined_call_operand.vmem [shape: f32[8,32], index: 1, kind: input, shape index: {}]
  %s2 = inlined_call_operand.hbm [shape: f32[8,32,128], index: 2, kind: input, shape index: {}]
  %s3 = inlined_call_operand.hbm [shape: f32[8,1,128], index: 3, kind: output, shape index: {}]
  %s4 = sld [smem:[#allocation0]]
  $region30: #{tpu_custom_call.1} parent=0
    _
  %s6 = ssub.s32 1, %s4
  %s7 = scalar_select 0, %s6, %s4
  $region1: #{tpu_custom_call.1} parent=0
    #allocation2 [shape = 'u8[131072]{0}', space=vmem, size = 0x20000, scoped, tag = 'input window, operand 2, single buffered']
    #allocation3 [shape = 's32[1]{0}', space=sflag, size = 0x4, scoped, tag = 'scoped memory for tpu_custom_call.1']
    #allocation4 [shape = 's32[1]{0}', space=sflag, size = 0x4, scoped, tag = 'scoped memory for tpu_custom_call.1']
    #allocation5 [shape = 'u8[4096]{0}', space=vmem, size = 0x1000, scoped, tag = 'output window, operand 0, single buffered']
    %8 = vsyncpa [#allocation3], 0
    %9 = vsyncpa [#allocation4], 0
    // Predicated region
    $region2: #{tpu_custom_call.1} parent=1 // pred_check
      _
    $region3: #{tpu_custom_call.1} parent=1 // pred_check_branch
      %11 = sbr.rel (0) target = $region5
    $region4: #{tpu_custom_call.1} parent=1 // pred_region
      _
    $region5: #{tpu_custom_call.1} parent=1 // pred_fallthru
      _
    // Predicated region
    $region6: #{tpu_custom_call.1} parent=1 // pred_check
      _
    $region7: #{tpu_custom_call.1} parent=1 // pred_check_branch
      %13 = sbr.rel (0) target = $region9
    $region8: #{tpu_custom_call.1} parent=1 // pred_region
      _
    $region9: #{tpu_custom_call.1} parent=1 // pred_fallthru
      _
    // Predicated region
    $region10: #{tpu_custom_call.1} parent=1 // pred_check
      _
    $region11: #{tpu_custom_call.1} parent=1 // pred_check_branch
      %15 = sbr.rel (0) target = $region13
    $region12: #{tpu_custom_call.1} parent=1 // pred_region
      %s17 = ssub.s32 4096, 4096
      %18 = vsyncadd [#allocation3], %s17
      %s19 = sshll.u32 [#allocation2], 4
      %s20 = int_to_ptr.vmem [resolvable:$true] %s19
      %25 = dma.hbm_to_vmem [thread:$0]  %s2, 4096, %s20, [#allocation3], 128, 128, 8
    $region13: #{tpu_custom_call.1} parent=1 // pred_fallthru
      _
    // Predicated region
    $region14: #{tpu_custom_call.1} parent=1 // pred_check
      _
    $region15: #{tpu_custom_call.1} parent=1 // pred_check_branch
      %27 = sbr.rel (0) target = $region17
    $region16: #{tpu_custom_call.1} parent=1 // pred_region
      %28 = dma.done [#allocation3], 4096
    $region17: #{tpu_custom_call.1} parent=1 // pred_fallthru
      _
    %v29 = vld [vmem:[#allocation2] sm:$0xff]
    %v30 = vld [vmem:[#allocation2 + $0x8] sm:$0xff]
    %v31 = vld [vmem:[#allocation2 + $0x10] sm:$0xff]
    %v32 = vld [vmem:[#allocation2 + $0x18] sm:$0xff]
    %v33 = vld [vmem:[#allocation2 + $0x20] sm:$0xff]
    %v34 = vld [vmem:[#allocation2 + $0x28] sm:$0xff]
    %v35 = vld [vmem:[#allocation2 + $0x30] sm:$0xff]
    %v36 = vld [vmem:[#allocation2 + $0x38] sm:$0xff]
    %v37 = vld [vmem:[#allocation2 + $0x40] sm:$0xff]
    %v38 = vld [vmem:[#allocation2 + $0x48] sm:$0xff]
    %v39 = vld [vmem:[#allocation2 + $0x50] sm:$0xff]
    %v40 = vld [vmem:[#allocation2 + $0x58] sm:$0xff]
    %v41 = vld [vmem:[#allocation2 + $0x60] sm:$0xff]
    %v42 = vld [vmem:[#allocation2 + $0x68] sm:$0xff]
    %v43 = vld [vmem:[#allocation2 + $0x70] sm:$0xff]
    %v44 = vld [vmem:[#allocation2 + $0x78] sm:$0xff]
    %v45 = vld [vmem:[#allocation2 + $0x80] sm:$0xff]
    %v46 = vld [vmem:[#allocation2 + $0x88] sm:$0xff]
    %v47 = vld [vmem:[#allocation2 + $0x90] sm:$0xff]
    %v48 = vld [vmem:[#allocation2 + $0x98] sm:$0xff]
    %v49 = vld [vmem:[#allocation2 + $0xa0] sm:$0xff]
    %v50 = vld [vmem:[#allocation2 + $0xa8] sm:$0xff]
    %v51 = vld [vmem:[#allocation2 + $0xb0] sm:$0xff]
    %v52 = vld [vmem:[#allocation2 + $0xb8] sm:$0xff]
    %v53 = vld [vmem:[#allocation2 + $0xc0] sm:$0xff]
    %v54 = vld [vmem:[#allocation2 + $0xc8] sm:$0xff]
    %v55 = vld [vmem:[#allocation2 + $0xd0] sm:$0xff]
    %v56 = vld [vmem:[#allocation2 + $0xd8] sm:$0xff]
    %v57 = vld [vmem:[#allocation2 + $0xe0] sm:$0xff]
    %v58 = vld [vmem:[#allocation2 + $0xe8] sm:$0xff]
    %v59 = vld [vmem:[#allocation2 + $0xf0] sm:$0xff]
    %v60 = vld [vmem:[#allocation2 + $0xf8] sm:$0xff]
    %v61 = vld [vmem:[%s1] sm:$0xff]
    %v62 = vlaneseq
    %v63 = vshrl.u32 %v62, 7
    %v64 = vsub.s32 0, %v63
    %v65 = vrot.slane %v61, %v64
    %67 = vbcast.lane.b32.xlu0 %v65, 256
    %v68 = vpop.permute.xlu0 %67
    %s70 = sor.u32 256, 8
    %71 = vbcast.lane.b32.xlu0 %v65, %s70
    %v72 = vpop.permute.xlu0 %71
    %s74 = sor.u32 256, 16
    %75 = vbcast.lane.b32.xlu0 %v65, %s74
    %v76 = vpop.permute.xlu0 %75
    %s78 = sor.u32 256, 24
    %79 = vbcast.lane.b32.xlu0 %v65, %s78
    %v80 = vpop.permute.xlu0 %79
    %v81 = vlaneseq
    %v82 = vshrl.u32 %v81, 7
    %v83 = vsub.s32 1, %v82
    %v84 = vrot.slane %v61, %v83
    %86 = vbcast.lane.b32.xlu0 %v84, 256
    %v87 = vpop.permute.xlu0 %86
    %s89 = sor.u32 256, 8
    %90 = vbcast.lane.b32.xlu0 %v84, %s89
    %v91 = vpop.permute.xlu0 %90
    %s93 = sor.u32 256, 16
    %94 = vbcast.lane.b32.xlu0 %v84, %s93
    %v95 = vpop.permute.xlu0 %94
    %s97 = sor.u32 256, 24
    %98 = vbcast.lane.b32.xlu0 %v84, %s97
    %v99 = vpop.permute.xlu0 %98
    %v100 = vlaneseq
    %v101 = vshrl.u32 %v100, 7
    %v102 = vsub.s32 2, %v101
    %v103 = vrot.slane %v61, %v102
    %105 = vbcast.lane.b32.xlu0 %v103, 256
    %v106 = vpop.permute.xlu0 %105
    %s108 = sor.u32 256, 8
    %109 = vbcast.lane.b32.xlu0 %v103, %s108
    %v110 = vpop.permute.xlu0 %109
    %s112 = sor.u32 256, 16
    %113 = vbcast.lane.b32.xlu0 %v103, %s112
    %v114 = vpop.permute.xlu0 %113
    %s116 = sor.u32 256, 24
    %117 = vbcast.lane.b32.xlu0 %v103, %s116
    %v118 = vpop.permute.xlu0 %117
    %v119 = vlaneseq
    %v120 = vshrl.u32 %v119, 7
    %v121 = vsub.s32 3, %v120
    %v122 = vrot.slane %v61, %v121
    %124 = vbcast.lane.b32.xlu0 %v122, 256
    %v125 = vpop.permute.xlu0 %124
    %s127 = sor.u32 256, 8
    %128 = vbcast.lane.b32.xlu0 %v122, %s127
    %v129 = vpop.permute.xlu0 %128
    %s131 = sor.u32 256, 16
    %132 = vbcast.lane.b32.xlu0 %v122, %s131
    %v133 = vpop.permute.xlu0 %132
    %s135 = sor.u32 256, 24
    %136 = vbcast.lane.b32.xlu0 %v122, %s135
    %v137 = vpop.permute.xlu0 %136
    %v138 = vlaneseq
    %v139 = vshrl.u32 %v138, 7
    %v140 = vsub.s32 4, %v139
    %v141 = vrot.slane %v61, %v140
    %143 = vbcast.lane.b32.xlu0 %v141, 256
    %v144 = vpop.permute.xlu0 %143
    %s146 = sor.u32 256, 8
    %147 = vbcast.lane.b32.xlu0 %v141, %s146
    %v148 = vpop.permute.xlu0 %147
    %s150 = sor.u32 256, 16
    %151 = vbcast.lane.b32.xlu0 %v141, %s150
    %v152 = vpop.permute.xlu0 %151
    %s154 = sor.u32 256, 24
    %155 = vbcast.lane.b32.xlu0 %v141, %s154
    %v156 = vpop.permute.xlu0 %155
    %v157 = vlaneseq
    %v158 = vshrl.u32 %v157, 7
    %v159 = vsub.s32 5, %v158
    %v160 = vrot.slane %v61, %v159
    %162 = vbcast.lane.b32.xlu0 %v160, 256
    %v163 = vpop.permute.xlu0 %162
    %s165 = sor.u32 256, 8
    %166 = vbcast.lane.b32.xlu0 %v160, %s165
    %v167 = vpop.permute.xlu0 %166
    %s169 = sor.u32 256, 16
    %170 = vbcast.lane.b32.xlu0 %v160, %s169
    %v171 = vpop.permute.xlu0 %170
    %s173 = sor.u32 256, 24
    %174 = vbcast.lane.b32.xlu0 %v160, %s173
    %v175 = vpop.permute.xlu0 %174
    %v176 = vlaneseq
    %v177 = vshrl.u32 %v176, 7
    %v178 = vsub.s32 6, %v177
    %v179 = vrot.slane %v61, %v178
    %181 = vbcast.lane.b32.xlu0 %v179, 256
    %v182 = vpop.permute.xlu0 %181
    %s184 = sor.u32 256, 8
    %185 = vbcast.lane.b32.xlu0 %v179, %s184
    %v186 = vpop.permute.xlu0 %185
    %s188 = sor.u32 256, 16
    %189 = vbcast.lane.b32.xlu0 %v179, %s188
    %v190 = vpop.permute.xlu0 %189
    %s192 = sor.u32 256, 24
    %193 = vbcast.lane.b32.xlu0 %v179, %s192
    %v194 = vpop.permute.xlu0 %193
    %v195 = vlaneseq
    %v196 = vshrl.u32 %v195, 7
    %v197 = vsub.s32 7, %v196
    %v198 = vrot.slane %v61, %v197
    %200 = vbcast.lane.b32.xlu0 %v198, 256
    %v201 = vpop.permute.xlu0 %200
    %s203 = sor.u32 256, 8
    %204 = vbcast.lane.b32.xlu0 %v198, %s203
    %v205 = vpop.permute.xlu0 %204
    %s207 = sor.u32 256, 16
    %208 = vbcast.lane.b32.xlu0 %v198, %s207
    %v209 = vpop.permute.xlu0 %208
    %s211 = sor.u32 256, 24
    %212 = vbcast.lane.b32.xlu0 %v198, %s211
    %v213 = vpop.permute.xlu0 %212
    %v214 = vmul.f32 %v29, %v68
    %v215 = vmul.f32 %v30, %v72
    %v216 = vmul.f32 %v31, %v76
    %v217 = vmul.f32 %v32, %v80
    %v218 = vmul.f32 %v33, %v87
    %v219 = vmul.f32 %v34, %v91
    %v220 = vmul.f32 %v35, %v95
    %v221 = vmul.f32 %v36, %v99
    %v222 = vmul.f32 %v37, %v106
    %v223 = vmul.f32 %v38, %v110
    %v224 = vmul.f32 %v39, %v114
    %v225 = vmul.f32 %v40, %v118
    %v226 = vmul.f32 %v41, %v125
    %v227 = vmul.f32 %v42, %v129
    %v228 = vmul.f32 %v43, %v133
    %v229 = vmul.f32 %v44, %v137
    %v230 = vmul.f32 %v45, %v144
    %v231 = vmul.f32 %v46, %v148
    %v232 = vmul.f32 %v47, %v152
    %v233 = vmul.f32 %v48, %v156
    %v234 = vmul.f32 %v49, %v163
    %v235 = vmul.f32 %v50, %v167
    %v236 = vmul.f32 %v51, %v171
    %v237 = vmul.f32 %v52, %v175
    %v238 = vmul.f32 %v53, %v182
    %v239 = vmul.f32 %v54, %v186
    %v240 = vmul.f32 %v55, %v190
    %v241 = vmul.f32 %v56, %v194
    %v242 = vmul.f32 %v57, %v201
    %v243 = vmul.f32 %v58, %v205
    %v244 = vmul.f32 %v59, %v209
    %v245 = vmul.f32 %v60, %v213
    %v246 = vadd.f32 %v214, %v215
    %v247 = vadd.f32 %v246, %v216
    %v248 = vadd.f32 %v247, %v217
    %v249 = vrot.slane %v248, 4
    %v250 = vadd.f32 %v248, %v249
    %v251 = vrot.slane %v250, 2
    %v252 = vadd.f32 %v250, %v251
    %v253 = vrot.slane %v252, 1
    %v254 = vadd.f32 %v252, %v253
    %v255 = vadd.f32 %v218, %v219
    %v256 = vadd.f32 %v255, %v220
    %v257 = vadd.f32 %v256, %v221
    %v258 = vrot.slane %v257, 4
    %v259 = vadd.f32 %v257, %v258
    %v260 = vrot.slane %v259, 2
    %v261 = vadd.f32 %v259, %v260
    %v262 = vrot.slane %v261, 1
    %v263 = vadd.f32 %v261, %v262
    %v264 = vadd.f32 %v222, %v223
    %v265 = vadd.f32 %v264, %v224
    %v266 = vadd.f32 %v265, %v225
    %v267 = vrot.slane %v266, 4
    %v268 = vadd.f32 %v266, %v267
    %v269 = vrot.slane %v268, 2
    %v270 = vadd.f32 %v268, %v269
    %v271 = vrot.slane %v270, 1
    %v272 = vadd.f32 %v270, %v271
    %v273 = vadd.f32 %v226, %v227
    %v274 = vadd.f32 %v273, %v228
    %v275 = vadd.f32 %v274, %v229
    %v276 = vrot.slane %v275, 4
    %v277 = vadd.f32 %v275, %v276
    %v278 = vrot.slane %v277, 2
    %v279 = vadd.f32 %v277, %v278
    %v280 = vrot.slane %v279, 1
    %v281 = vadd.f32 %v279, %v280
    %v282 = vadd.f32 %v230, %v231
    %v283 = vadd.f32 %v282, %v232
    %v284 = vadd.f32 %v283, %v233
    %v285 = vrot.slane %v284, 4
    %v286 = vadd.f32 %v284, %v285
    %v287 = vrot.slane %v286, 2
    %v288 = vadd.f32 %v286, %v287
    %v289 = vrot.slane %v288, 1
    %v290 = vadd.f32 %v288, %v289
    %v291 = vadd.f32 %v234, %v235
    %v292 = vadd.f32 %v291, %v236
    %v293 = vadd.f32 %v292, %v237
    %v294 = vrot.slane %v293, 4
    %v295 = vadd.f32 %v293, %v294
    %v296 = vrot.slane %v295, 2
    %v297 = vadd.f32 %v295, %v296
    %v298 = vrot.slane %v297, 1
    %v299 = vadd.f32 %v297, %v298
    %v300 = vadd.f32 %v238, %v239
    %v301 = vadd.f32 %v300, %v240
    %v302 = vadd.f32 %v301, %v241
    %v303 = vrot.slane %v302, 4
    %v304 = vadd.f32 %v302, %v303
    %v305 = vrot.slane %v304, 2
    %v306 = vadd.f32 %v304, %v305
    %v307 = vrot.slane %v306, 1
    %v308 = vadd.f32 %v306, %v307
    %v309 = vadd.f32 %v242, %v243
    %v310 = vadd.f32 %v309, %v244
    %v311 = vadd.f32 %v310, %v245
    %v312 = vrot.slane %v311, 4
    %v313 = vadd.f32 %v311, %v312
    %v314 = vrot.slane %v313, 2
    %v315 = vadd.f32 %v313, %v314
    %v316 = vrot.slane %v315, 1
    %v317 = vadd.f32 %v315, %v316
    %s318 = smul.u32 0, 128
    %v319 = vlaneseq
    %v320 = vand.u32 %v319, 127
    %v321 = vstv %s318
    %v322 = vadd.s32 %v321, %v320
    %v323 = vld [vmem:[%s0] sm:$0xff]
    %324 = vset.pattern.permute.xlu0 0
    %325 = vperm.xlu0 %324, %v323
    %v326 = vpop.permute.xlu0 %325
    %vm327 = vcmp.eq.s32.totalorder %v322, %v326
    %vm336 = vcmask 1041409
    %v337 = vsel %vm336, %v263, %v254
    %vm338 = vcmask 1042434
    %v339 = vsel %vm338, %v272, %v337
    %vm340 = vcmask 1043459
    %v341 = vsel %vm340, %v281, %v339
    %vm342 = vcmask 1044484
    %v343 = vsel %vm342, %v290, %v341
    %vm344 = vcmask 1045509
    %v345 = vsel %vm344, %v299, %v343
    %vm346 = vcmask 1046534
    %v347 = vsel %vm346, %v308, %v345
    %vm348 = vcmask 1047559
    %v349 = vsel %vm348, %v317, %v347
    %v351 = vsel %vm327, 0.0, %v349
    %vm352 = vcmp.lt.s32.totalorder %v322, 8
    %v353 = vsel %vm352, %v351, -inf
    %v355 = vcombine.high %v353, %v353
    %v357 = vunpack.c.l.s4 1966171168
    %v358 = vunpack.c.0.s8 %v357
    %v359 = vlaneseq
    %v360 = vshrl.u32 %v359, 7
    %v361 = vsub.s32 %v358, %v360
    %v362 = vrot.slane %v353, %v361
    %v364 = vunpack.c.l.s4 1966171168
    %v365 = vunpack.c.0.s8 %v364
    %v366 = vlaneseq
    %v367 = vshrl.u32 %v366, 7
    %v368 = vsub.s32 %v365, %v367
    %v369 = vrot.slane %v355, %v368
    %v370 = vcombine.high %v362, %v362
    %v371 = vcombine.high %v369, %v369
    %v373 = vunpack.c.l.s4 1966171168
    %v374 = vunpack.c.0.s8 %v373
    %v375 = vlaneseq
    %v376 = vshrl.u32 %v375, 7
    %v377 = vsub.s32 %v374, %v376
    %v378 = vrot.slane %v362, %v377
    %v380 = vunpack.c.l.s4 1966171168
    %v381 = vunpack.c.0.s8 %v380
    %v382 = vlaneseq
    %v383 = vshrl.u32 %v382, 7
    %v384 = vsub.s32 %v381, %v383
    %v385 = vrot.slane %v369, %v384
    %v387 = vunpack.c.l.s4 1966171168
    %v388 = vunpack.c.0.s8 %v387
    %v389 = vlaneseq
    %v390 = vshrl.u32 %v389, 7
    %v391 = vsub.s32 %v388, %v390
    %v392 = vrot.slane %v370, %v391
    %v394 = vunpack.c.l.s4 1966171168
    %v395 = vunpack.c.0.s8 %v394
    %v396 = vlaneseq
    %v397 = vshrl.u32 %v396, 7
    %v398 = vsub.s32 %v395, %v397
    %v399 = vrot.slane %v371, %v398
    %v400 = vcombine.high %v378, %v378
    %v401 = vcombine.high %v385, %v385
    %v402 = vcombine.high %v392, %v392
    %v403 = vcombine.high %v399, %v399
    %412 = vst [vmem:[#allocation5] sm:$0x1] %v378
    %413 = vst [vmem:[#allocation5 + $0x1] sm:$0x1] %v392
    %414 = vst [vmem:[#allocation5 + $0x2] sm:$0x1] %v400
    %415 = vst [vmem:[#allocation5 + $0x3] sm:$0x1] %v402
    %416 = vst [vmem:[#allocation5 + $0x4] sm:$0x1] %v385
    %417 = vst [vmem:[#allocation5 + $0x5] sm:$0x1] %v399
    %418 = vst [vmem:[#allocation5 + $0x6] sm:$0x1] %v401
    %419 = vst [vmem:[#allocation5 + $0x7] sm:$0x1] %v403
    %p420 = scmp.eq.s32.totalorder 0, 0
    // Predicated region
    $region18: #{tpu_custom_call.1} parent=1 // pred_check
      %p421 = pneg %p420
    $region19: #{tpu_custom_call.1} parent=1 // pred_check_branch
      %423 = sbr.rel (%p421) target = $region21
    $region20: #{tpu_custom_call.1} parent=1 // pred_region
      %v424 = vld [vmem:[#allocation5] sm:$0x1]
      %v425 = vld [vmem:[#allocation5 + $0x1] sm:$0x1]
      %v426 = vld [vmem:[#allocation5 + $0x2] sm:$0x1]
      %v427 = vld [vmem:[#allocation5 + $0x3] sm:$0x1]
      %v428 = vld [vmem:[#allocation5 + $0x4] sm:$0x1]
      %v429 = vld [vmem:[#allocation5 + $0x5] sm:$0x1]
      %v430 = vld [vmem:[#allocation5 + $0x6] sm:$0x1]
      %v431 = vld [vmem:[#allocation5 + $0x7] sm:$0x1]
      %vm432 = vcmask 1040384
      %v433 = vsel %vm432, %v424, -inf
      %434 = vmax.xlane.f32.xlu0 %v433
      %v435 = vpop.xlane.xlu0 %434
      %v436 = vsel %vm432, %v425, -inf
      %437 = vmax.xlane.f32.xlu0 %v436
      %v438 = vpop.xlane.xlu0 %437
      %v439 = vsel %vm432, %v426, -inf
      %440 = vmax.xlane.f32.xlu0 %v439
      %v441 = vpop.xlane.xlu0 %440
      %v442 = vsel %vm432, %v427, -inf
      %443 = vmax.xlane.f32.xlu0 %v442
      %v444 = vpop.xlane.xlu0 %443
      %v445 = vsel %vm432, %v428, -inf
      %446 = vmax.xlane.f32.xlu0 %v445
      %v447 = vpop.xlane.xlu0 %446
      %v448 = vsel %vm432, %v429, -inf
      %449 = vmax.xlane.f32.xlu0 %v448
      %v450 = vpop.xlane.xlu0 %449
      %v451 = vsel %vm432, %v430, -inf
      %452 = vmax.xlane.f32.xlu0 %v451
      %v453 = vpop.xlane.xlu0 %452
      %v454 = vsel %vm432, %v431, -inf
      %455 = vmax.xlane.f32.xlu0 %v454
      %v456 = vpop.xlane.xlu0 %455
      %v457 = vsub.f32 %v424, %v435
      %v458 = vsub.f32 %v425, %v438
      %v459 = vsub.f32 %v426, %v441
      %v460 = vsub.f32 %v427, %v444
      %v461 = vsub.f32 %v428, %v447
      %v462 = vsub.f32 %v429, %v450
      %v463 = vsub.f32 %v430, %v453
      %v464 = vsub.f32 %v431, %v456
      %v465 = vmul.f32 %v457, 1.442695
      %v466 = vpow.pop %v465
      %v467 = vmul.f32 %v458, 1.442695
      %v468 = vpow.pop %v467
      %v469 = vmul.f32 %v459, 1.442695
      %v470 = vpow.pop %v469
      %v471 = vmul.f32 %v460, 1.442695
      %v472 = vpow.pop %v471
      %v473 = vmul.f32 %v461, 1.442695
      %v474 = vpow.pop %v473
      %v475 = vmul.f32 %v462, 1.442695
      %v476 = vpow.pop %v475
      %v477 = vmul.f32 %v463, 1.442695
      %v478 = vpow.pop %v477
      %v479 = vmul.f32 %v464, 1.442695
      %v480 = vpow.pop %v479
      %v481 = vsel %vm432, %v466, 0.0
      %482 = vadd.xlane.f32.xlu0 %v481
      %v483 = vpop.xlane.xlu0 %482
      %v484 = vsel %vm432, %v468, 0.0
      %485 = vadd.xlane.f32.xlu0 %v484
      %v486 = vpop.xlane.xlu0 %485
      %v487 = vsel %vm432, %v470, 0.0
      %488 = vadd.xlane.f32.xlu0 %v487
      %v489 = vpop.xlane.xlu0 %488
      %v490 = vsel %vm432, %v472, 0.0
      %491 = vadd.xlane.f32.xlu0 %v490
      %v492 = vpop.xlane.xlu0 %491
      %v493 = vsel %vm432, %v474, 0.0
      %494 = vadd.xlane.f32.xlu0 %v493
      %v495 = vpop.xlane.xlu0 %494
      %v496 = vsel %vm432, %v476, 0.0
      %497 = vadd.xlane.f32.xlu0 %v496
      %v498 = vpop.xlane.xlu0 %497
      %v499 = vsel %vm432, %v478, 0.0
      %500 = vadd.xlane.f32.xlu0 %v499
      %v501 = vpop.xlane.xlu0 %500
      %v502 = vsel %vm432, %v480, 0.0
      %503 = vadd.xlane.f32.xlu0 %v502
      %v504 = vpop.xlane.xlu0 %503
      %v505 = vadd.f32 %v483, 0.0
      %v506 = vadd.f32 %v486, 0.0
      %v507 = vadd.f32 %v489, 0.0
      %v508 = vadd.f32 %v492, 0.0
      %v509 = vadd.f32 %v495, 0.0
      %v510 = vadd.f32 %v498, 0.0
      %v511 = vadd.f32 %v501, 0.0
      %v512 = vadd.f32 %v504, 0.0
      %v513 = vrcp.pop %v505
      %v514 = vmul.f32 %v466, %v513
      %v515 = vrcp.pop %v506
      %v516 = vmul.f32 %v468, %v515
      %v517 = vrcp.pop %v507
      %v518 = vmul.f32 %v470, %v517
      %v519 = vrcp.pop %v508
      %v520 = vmul.f32 %v472, %v519
      %v521 = vrcp.pop %v509
      %v522 = vmul.f32 %v474, %v521
      %v523 = vrcp.pop %v510
      %v524 = vmul.f32 %v476, %v523
      %v525 = vrcp.pop %v511
      %v526 = vmul.f32 %v478, %v525
      %v527 = vrcp.pop %v512
      %v528 = vmul.f32 %v480, %v527
      %529 = vst [vmem:[#allocation5] sm:$0x1] %v514
      %530 = vst [vmem:[#allocation5 + $0x1] sm:$0x1] %v516
      %531 = vst [vmem:[#allocation5 + $0x2] sm:$0x1] %v518
      %532 = vst [vmem:[#allocation5 + $0x3] sm:$0x1] %v520
      %533 = vst [vmem:[#allocation5 + $0x4] sm:$0x1] %v522
      %534 = vst [vmem:[#allocation5 + $0x5] sm:$0x1] %v524
      %535 = vst [vmem:[#allocation5 + $0x6] sm:$0x1] %v526
      %536 = vst [vmem:[#allocation5 + $0x7] sm:$0x1] %v528
    $region21: #{tpu_custom_call.1} parent=1 // pred_fallthru
      _
    // Predicated region
    $region22: #{tpu_custom_call.1} parent=1 // pred_check
      _
    $region23: #{tpu_custom_call.1} parent=1 // pred_check_branch
      %538 = sbr.rel (0) target = $region25
    $region24: #{tpu_custom_call.1} parent=1 // pred_region
      %s540 = ssub.s32 128, 128
      %541 = vsyncadd [#allocation4], %s540
      %s542 = sshll.u32 [#allocation5], 4
      %s543 = int_to_ptr.vmem [resolvable:$true] %s542
      %548 = dma.vmem_to_hbm [thread:$0]  %s543, 128, %s3, [#allocation4], 16, 16, 1
    $region25: #{tpu_custom_call.1} parent=1 // pred_fallthru
      _
    // Predicated region
    $region26: #{tpu_custom_call.1} parent=1 // pred_check
      _
    $region27: #{tpu_custom_call.1} parent=1 // pred_check_branch
      %550 = sbr.rel (0) target = $region29
    $region28: #{tpu_custom_call.1} parent=1 // pred_region
      %551 = dma.done [#allocation4], 128
    $region29: #{tpu_custom_call.1} parent=1 // pred_fallthru
      _
    %552 = vsyncpa [#allocation3], 1
    %553 = vsyncpa [#allocation4], 1

</llo_original>
